<compile_context>
chip_gen: v7x
topology: tpu7x:2x2x1
jax: 0.10.0
libtpu: 0.0.40
codegen_flags: <defaults>
</compile_context>

<pallas_src>
import math

import jax
import jax.numpy as jnp
from jax.experimental import pallas as pl
from jax.experimental.pallas import tpu as pltpu  # noqa: F401  (TPU backend)


def _attention_kernel(x_ref, wqk_ref, wvl_ref, aux_ref, out_ref):
    x = x_ref[...]                                   # (N, C) f32
    n, c = x.shape
    x_bf = x.astype(jnp.bfloat16)                    # MXU-operand copy

    wqk = wqk_ref[...]                               # (C, 2C) bf16: [Wq^T/sqrt(C) | Wk^T]
    wvl = wvl_ref[...]                               # (C, 2C) f32 : [Wv^T | Wl^T]
    aux = aux_ref[...]                               # (3, 2C) f32

    b_qk = aux[0:1, :]                               # (1, 2C) = [bq/sqrt(C) | bk]
    b_v = aux[1:2, :c]                               # (1, C)
    b_l = aux[1:2, c:]                               # (1, C)
    gamma = aux[2:3, :c]                             # (1, C)
    beta = aux[2:3, c:]                              # (1, C)

    # Fused Q/K projection: one lane-dense bf16 MXU matmul, f32 accumulation.
    qk = jnp.dot(x_bf, wqk, preferred_element_type=jnp.float32) + b_qk   # (N, 2C)
    x_q = qk[:, :c]
    x_k = qk[:, c:]

    # Channel-channel energy: contract the N (leading) axis directly — no
    # explicit transpose.  The 1/sqrt(C) scale is already folded into Wq^T/bq.
    energy = jax.lax.dot_general(
        x_q.astype(jnp.bfloat16), x_k.astype(jnp.bfloat16),
        dimension_numbers=(((0,), (0,)), ((), ())),
        preferred_element_type=jnp.float32,
    )                                                                     # (C, C)

    # Row-wise softmax; EUP approx reciprocal + one Newton-Raphson step
    # (restores near-exact division, extra FMA on a (C,1) vector is free).
    e_max = jnp.max(energy, axis=-1, keepdims=True)
    e_exp = jnp.exp(energy - e_max)
    denom = jnp.sum(e_exp, axis=-1, keepdims=True)
    r = pl.reciprocal(denom, approx=True)
    r = r * (2.0 - denom * r)
    attn = e_exp * r                                                      # (C, C)

    # Algebraic fold of the value / LBR-linear path:
    #   (x @ Wv^T + bv) @ (attn - I) @ Wl^T + bl  ==  x @ M + b'
    # with  M  = Wv^T @ (attn - I) @ Wl^T   (C x C, negligible flops, f32)
    #       b' = bv @ (attn - I) @ Wl^T + bl
    eye = (jax.lax.broadcasted_iota(jnp.int32, (c, c), 0)
           == jax.lax.broadcasted_iota(jnp.int32, (c, c), 1)).astype(jnp.float32)
    a_wl = jnp.dot(attn - eye, wvl[:, c:], preferred_element_type=jnp.float32)   # (C, C)
    m_mat = jnp.dot(wvl[:, :c], a_wl, preferred_element_type=jnp.float32)        # (C, C)
    b_fused = jnp.dot(b_v, a_wl, preferred_element_type=jnp.float32) + b_l       # (1, C)

    # Single remaining N-scale matmul on the value side (bf16 operands).
    x_r = jnp.dot(x_bf, m_mat.astype(jnp.bfloat16),
                  preferred_element_type=jnp.float32) + b_fused                  # (N, C)

    # BatchNorm1d, training mode (biased batch stats), one-pass moments.
    # (At N=64 the axis-0 reductions are cheap; the tiled large-N version would
    #  accumulate [sum | sum_sq] per N-tile with an MXU ones-row matmul.)
    inv_n = 1.0 / n
    mean = jnp.sum(x_r, axis=0, keepdims=True) * inv_n                    # (1, C)
    mean_sq = jnp.sum(x_r * x_r, axis=0, keepdims=True) * inv_n
    var = jnp.maximum(mean_sq - mean * mean, 0.0)                         # clamp: no NaN
    x_r = (x_r - mean) * jax.lax.rsqrt(var + 1e-5)
    x_r = x_r * gamma + beta
    x_r = jnp.maximum(x_r, 0.0)

    # Sparse-tensor add on a shared coordinate map == elementwise feature add.
    # TODO(synk): MinkowskiEngine SparseTensor coordinate-manager bookkeeping has
    # no Pallas equivalent; the kernel operates on the dense (N, C) feature block.
    out_ref[...] = x_r + x


def _full_spec(shape):
    return pl.BlockSpec(shape, lambda: (0,) * len(shape))


def prepare_params(params):
    """One-time parameter transform (cache the result; do NOT call per forward):
    fuse the four Linear weights into two lane-dense slabs, fold the 1/sqrt(C)
    softmax scale into the Q columns, and pre-cast the MXU slab to bf16."""
    c = params["wq"].shape[0]
    inv_sqrt_c = 1.0 / math.sqrt(c)
    wqk = jnp.concatenate(
        [params["wq"].T * inv_sqrt_c, params["wk"].T], axis=1
    ).astype(jnp.bfloat16)                                                # (C, 2C) bf16
    wvl = jnp.concatenate(
        [params["wv"].T, params["wl"].T], axis=1
    ).astype(jnp.float32)                                                 # (C, 2C) f32
    aux = jnp.stack([
        jnp.concatenate([params["bq"] * inv_sqrt_c, params["bk"]]),
        jnp.concatenate([params["bv"], params["bl"]]),
        jnp.concatenate([params["bn_gamma"], params["bn_beta"]]),
    ]).astype(jnp.float32)                                                # (3, 2C) f32
    return {"wqk": wqk, "wvl": wvl, "aux": aux}


@jax.jit
def resunet_channel_attention(x, prepped):
    """x: (N, C) float32 sparse-tensor features; prepped: output of prepare_params."""
    n, c = x.shape
    # The whole problem fits in one VMEM tile at these shapes: no grid,
    # full-array BlockSpecs, single kernel invocation (no per-step overhead).
    return pl.pallas_call(
        _attention_kernel,
        out_shape=jax.ShapeDtypeStruct((n, c), jnp.float32),
        in_specs=[
            _full_spec((n, c)),        # x
            _full_spec((c, 2 * c)),    # bf16 [Wq^T/sqrt(C) | Wk^T]
            _full_spec((c, 2 * c)),    # f32  [Wv^T | Wl^T]
            _full_spec((3, 2 * c)),    # f32  biases / BN gamma,beta
        ],
        out_specs=_full_spec((n, c)),
    )(x, prepped["wqk"], prepped["wvl"], prepped["aux"])


def _init_params(key, c):
    """Deterministic synthetic parameters (nn.Linear(C, C) / BatchNorm1d(C) layout)."""
    keys = jax.random.split(key, 8)
    scale = 1.0 / math.sqrt(c)
    return {
        "wq": jax.random.uniform(keys[0], (c, c), jnp.float32, -scale, scale),
        "bq": jax.random.uniform(keys[1], (c,), jnp.float32, -scale, scale),
        "wk": jax.random.uniform(keys[2], (c, c), jnp.float32, -scale, scale),
        "bk": jax.random.uniform(keys[3], (c,), jnp.float32, -scale, scale),
        "wv": jax.random.uniform(keys[4], (c, c), jnp.float32, -scale, scale),
        "bv": jax.random.uniform(keys[5], (c,), jnp.float32, -scale, scale),
        "wl": jax.random.uniform(keys[6], (c, c), jnp.float32, -scale, scale),
        "bl": jax.random.uniform(keys[7], (c,), jnp.float32, -scale, scale),
        "bn_gamma": jnp.ones((c,), jnp.float32),
        "bn_beta": jnp.zeros((c,), jnp.float32),
    }


def _reference(x, params):
    """Pure-JAX (f32) reference of the PyTorch forward for correctness checks."""
    c = x.shape[-1]
    x_q = x @ params["wq"].T + params["bq"]
    x_k = x @ params["wk"].T + params["bk"]
    x_v = x @ params["wv"].T + params["bv"]
    energy = (x_q.T @ x_k) / math.sqrt(c)
    attn = jax.nn.softmax(energy, axis=-1)
    x_r = x_v @ attn - x_v
    x_r = x_r @ params["wl"].T + params["bl"]
    mean = jnp.mean(x_r, axis=0, keepdims=True)
    var = jnp.mean((x_r - mean) ** 2, axis=0, keepdims=True)
    x_r = (x_r - mean) / jnp.sqrt(var + 1e-5)
    x_r = x_r * params["bn_gamma"] + params["bn_beta"]
    x_r = jnp.maximum(x_r, 0.0)
    return x_r + x


if __name__ == "__main__":
    N, C = 64, 32  # sparse tensor: N points, C channels
    key = jax.random.PRNGKey(0)
    k_x, k_p = jax.random.split(key)
    x = jax.random.normal(k_x, (N, C), jnp.float32)
    params = _init_params(k_p, C)

    prepped = prepare_params(params)   # one-time parameter transform, reused per call
    out = resunet_channel_attention(x, prepped)
    out = jax.block_until_ready(out)

    ref = _reference(x, params)
    assert out.shape == (N, C) and out.dtype == jnp.float32
    # Remaining error source is the bf16 MXU operand quantization (f32 accum);
    # the softmax approx-reciprocal was refined to full precision.  The BN
    # rescale amplifies that quantization ~3x, so compare at a few e-2.
    assert jnp.allclose(out, ref, atol=2e-2, rtol=1e-2), "mismatch vs reference"

    print("KERNEL_OK")
</pallas_src>

<mosaic_0001>
module attributes {stable_mosaic.version = 11 : i64} {
  func.func @_attention_kernel(%arg0: memref<64x32xf32, #tpu.memory_space<vmem>>, %arg1: memref<32x64xbf16, #tpu.memory_space<vmem>>, %arg2: memref<32x64xf32, #tpu.memory_space<vmem>>, %arg3: memref<3x64xf32, #tpu.memory_space<vmem>>, %arg4: memref<64x32xf32, #tpu.memory_space<vmem>>) attributes {dimension_semantics = [], scalar_prefetch = 0 : i64, scratch_operands = 0 : i64, tpu.core_type = #tpu.core_type<tc>} {
    %c0 = arith.constant 0 : index
    %c0_0 = arith.constant 0 : index
    %0 = vector.load %arg0[%c0, %c0_0] : memref<64x32xf32, #tpu.memory_space<vmem>>, vector<64x32xf32>
    %1 = arith.truncf %0 : vector<64x32xf32> to vector<64x32xbf16>
    %c0_1 = arith.constant 0 : index
    %c0_2 = arith.constant 0 : index
    %2 = vector.load %arg1[%c0_1, %c0_2] : memref<32x64xbf16, #tpu.memory_space<vmem>>, vector<32x64xbf16>
    %c0_3 = arith.constant 0 : index
    %c0_4 = arith.constant 0 : index
    %3 = vector.load %arg2[%c0_3, %c0_4] : memref<32x64xf32, #tpu.memory_space<vmem>>, vector<32x64xf32>
    %c0_5 = arith.constant 0 : index
    %c0_6 = arith.constant 0 : index
    %4 = vector.load %arg3[%c0_5, %c0_6] : memref<3x64xf32, #tpu.memory_space<vmem>>, vector<3x64xf32>
    %5 = vector.extract_strided_slice %4 {offsets = [0, 0], sizes = [1, 64], strides = [1, 1]} : vector<3x64xf32> to vector<1x64xf32>
    %6 = vector.extract_strided_slice %4 {offsets = [1, 0], sizes = [1, 32], strides = [1, 1]} : vector<3x64xf32> to vector<1x32xf32>
    %7 = vector.extract_strided_slice %4 {offsets = [1, 32], sizes = [1, 32], strides = [1, 1]} : vector<3x64xf32> to vector<1x32xf32>
    %8 = vector.extract_strided_slice %4 {offsets = [2, 0], sizes = [1, 32], strides = [1, 1]} : vector<3x64xf32> to vector<1x32xf32>
    %9 = vector.extract_strided_slice %4 {offsets = [2, 32], sizes = [1, 32], strides = [1, 1]} : vector<3x64xf32> to vector<1x32xf32>
    %cst = arith.constant dense<0.000000e+00> : vector<64x64xf32>
    %10 = tpu.matmul %1, %2, %cst {dimension_numbers = #tpu.dot_dimension_numbers<[1], [0], [0], [1], [0, 0, 1, 1], [], []>} : vector<64x32xbf16>, vector<32x64xbf16>, vector<64x64xf32> -> vector<64x64xf32>
    %11 = vector.broadcast %5 : vector<1x64xf32> to vector<64x64xf32>
    %12 = arith.addf %10, %11 : vector<64x64xf32>
    %13 = vector.extract_strided_slice %12 {offsets = [0, 0], sizes = [64, 32], strides = [1, 1]} : vector<64x64xf32> to vector<64x32xf32>
    %14 = vector.extract_strided_slice %12 {offsets = [0, 32], sizes = [64, 32], strides = [1, 1]} : vector<64x64xf32> to vector<64x32xf32>
    %15 = arith.truncf %13 : vector<64x32xf32> to vector<64x32xbf16>
    %16 = arith.truncf %14 : vector<64x32xf32> to vector<64x32xbf16>
    %cst_7 = arith.constant dense<0.000000e+00> : vector<32x32xf32>
    %17 = tpu.matmul %15, %16, %cst_7 {dimension_numbers = #tpu.dot_dimension_numbers<[0], [0], [1], [1], [0, 1, 1, 1], [], []>} : vector<64x32xbf16>, vector<64x32xbf16>, vector<32x32xf32> -> vector<32x32xf32>
    %cst_8 = arith.constant dense<0xFF800000> : vector<32xf32>
    %18 = vector.multi_reduction <maximumf>, %17, %cst_8 [1] : vector<32x32xf32> to vector<32xf32>
    %19 = vector.shape_cast %18 : vector<32xf32> to vector<32x1xf32>
    %20 = vector.broadcast %19 : vector<32x1xf32> to vector<32x32xf32>
    %21 = arith.subf %17, %20 : vector<32x32xf32>
    %22 = math.exp %21 : vector<32x32xf32>
    %cst_9 = arith.constant dense<0.000000e+00> : vector<32xf32>
    %23 = vector.multi_reduction <add>, %22, %cst_9 [1] : vector<32x32xf32> to vector<32xf32>
    %24 = vector.shape_cast %23 : vector<32xf32> to vector<32x1xf32>
    %25 = tpu.reciprocal %24 {approx = true} : vector<32x1xf32> -> vector<32x1xf32>
    %26 = arith.mulf %24, %25 : vector<32x1xf32>
    %cst_10 = arith.constant 2.000000e+00 : f32
    %27 = vector.broadcast %cst_10 : f32 to vector<32x1xf32>
    %28 = arith.subf %27, %26 : vector<32x1xf32>
    %29 = arith.mulf %25, %28 : vector<32x1xf32>
    %30 = vector.broadcast %29 : vector<32x1xf32> to vector<32x32xf32>
    %31 = arith.mulf %22, %30 : vector<32x32xf32>
    %32 = tpu.iota {dimensions = array<i32: 0>} : vector<32x32xi32>
    %33 = tpu.iota {dimensions = array<i32: 1>} : vector<32x32xi32>
    %34 = arith.cmpi eq, %32, %33 : vector<32x32xi32>
    %35 = arith.extui %34 : vector<32x32xi1> to vector<32x32xi32>
    %36 = arith.sitofp %35 : vector<32x32xi32> to vector<32x32xf32>
    %37 = arith.subf %31, %36 : vector<32x32xf32>
    %38 = vector.extract_strided_slice %3 {offsets = [0, 32], sizes = [32, 32], strides = [1, 1]} : vector<32x64xf32> to vector<32x32xf32>
    %cst_11 = arith.constant dense<0.000000e+00> : vector<32x32xf32>
    %39 = tpu.matmul %37, %38, %cst_11 {dimension_numbers = #tpu.dot_dimension_numbers<[1], [0], [0], [1], [0, 0, 1, 1], [], []>} : vector<32x32xf32>, vector<32x32xf32>, vector<32x32xf32> -> vector<32x32xf32>
    %40 = vector.extract_strided_slice %3 {offsets = [0, 0], sizes = [32, 32], strides = [1, 1]} : vector<32x64xf32> to vector<32x32xf32>
    %cst_12 = arith.constant dense<0.000000e+00> : vector<32x32xf32>
    %41 = tpu.matmul %40, %39, %cst_12 {dimension_numbers = #tpu.dot_dimension_numbers<[1], [0], [0], [1], [0, 0, 1, 1], [], []>} : vector<32x32xf32>, vector<32x32xf32>, vector<32x32xf32> -> vector<32x32xf32>
    %cst_13 = arith.constant dense<0.000000e+00> : vector<1x32xf32>
    %42 = tpu.matmul %6, %39, %cst_13 {dimension_numbers = #tpu.dot_dimension_numbers<[1], [0], [0], [1], [0, 0, 1, 1], [], []>} : vector<1x32xf32>, vector<32x32xf32>, vector<1x32xf32> -> vector<1x32xf32>
    %43 = arith.addf %42, %7 : vector<1x32xf32>
    %44 = arith.truncf %41 : vector<32x32xf32> to vector<32x32xbf16>
    %cst_14 = arith.constant dense<0.000000e+00> : vector<64x32xf32>
    %45 = tpu.matmul %1, %44, %cst_14 {dimension_numbers = #tpu.dot_dimension_numbers<[1], [0], [0], [1], [0, 0, 1, 1], [], []>} : vector<64x32xbf16>, vector<32x32xbf16>, vector<64x32xf32> -> vector<64x32xf32>
    %46 = vector.broadcast %43 : vector<1x32xf32> to vector<64x32xf32>
    %47 = arith.addf %45, %46 : vector<64x32xf32>
    %cst_15 = arith.constant dense<0.000000e+00> : vector<32xf32>
    %48 = vector.multi_reduction <add>, %47, %cst_15 [0] : vector<64x32xf32> to vector<32xf32>
    %49 = vector.shape_cast %48 : vector<32xf32> to vector<1x32xf32>
    %cst_16 = arith.constant 1.562500e-02 : f32
    %50 = vector.broadcast %cst_16 : f32 to vector<1x32xf32>
    %51 = arith.mulf %49, %50 : vector<1x32xf32>
    %52 = arith.mulf %47, %47 : vector<64x32xf32>
    %cst_17 = arith.constant dense<0.000000e+00> : vector<32xf32>
    %53 = vector.multi_reduction <add>, %52, %cst_17 [0] : vector<64x32xf32> to vector<32xf32>
    %54 = vector.shape_cast %53 : vector<32xf32> to vector<1x32xf32>
    %cst_18 = arith.constant 1.562500e-02 : f32
    %55 = vector.broadcast %cst_18 : f32 to vector<1x32xf32>
    %56 = arith.mulf %54, %55 : vector<1x32xf32>
    %57 = arith.mulf %51, %51 : vector<1x32xf32>
    %58 = arith.subf %56, %57 : vector<1x32xf32>
    %cst_19 = arith.constant 0.000000e+00 : f32
    %59 = vector.broadcast %cst_19 : f32 to vector<1x32xf32>
    %60 = arith.maximumf %58, %59 : vector<1x32xf32>
    %61 = vector.broadcast %51 : vector<1x32xf32> to vector<64x32xf32>
    %62 = arith.subf %47, %61 : vector<64x32xf32>
    %cst_20 = arith.constant 9.99999974E-6 : f32
    %63 = vector.broadcast %cst_20 : f32 to vector<1x32xf32>
    %64 = arith.addf %60, %63 : vector<1x32xf32>
    %65 = math.rsqrt %64 : vector<1x32xf32>
    %66 = vector.broadcast %65 : vector<1x32xf32> to vector<64x32xf32>
    %67 = arith.mulf %62, %66 : vector<64x32xf32>
    %68 = vector.broadcast %8 : vector<1x32xf32> to vector<64x32xf32>
    %69 = arith.mulf %67, %68 : vector<64x32xf32>
    %70 = vector.broadcast %9 : vector<1x32xf32> to vector<64x32xf32>
    %71 = arith.addf %69, %70 : vector<64x32xf32>
    %cst_21 = arith.constant 0.000000e+00 : f32
    %72 = vector.broadcast %cst_21 : f32 to vector<64x32xf32>
    %73 = arith.maximumf %71, %72 : vector<64x32xf32>
    %74 = arith.addf %73, %0 : vector<64x32xf32>
    %c0_22 = arith.constant 0 : index
    %c0_23 = arith.constant 0 : index
    %75 = vector.load %arg4[%c0_22, %c0_23] : memref<64x32xf32, #tpu.memory_space<vmem>>, vector<64x32xf32>
    tpu.vector_store %arg4[%c0_22, %c0_23], %74 {strides = array<i32>} : memref<64x32xf32, #tpu.memory_space<vmem>>, vector<64x32xf32>,
    return
  }
}

</mosaic_0001>

<llo_original>
// kernel: resunet_channel_attention.1
$region0: #{resunet_channel_attention.1}
  #allocation0 [shape = 'u32[]', space=smem, size = 0x4, offset = 0x4, fixed_abs, tag = 'smem constant byte address 0x4 - core index']
  #allocation1 [shape = 'u32[144,128]{1,0:T(1,128)}', space=vmem, size = 0x12000, scoped, tag = 'internal scratch']
  %s0 = inlined_call_operand.vmem [shape: f32[64,32], index: 0, kind: input, shape index: {}]
  %s1 = inlined_call_operand.vmem [shape: bf16[32,64], index: 1, kind: input, shape index: {}]
  %s2 = inlined_call_operand.vmem [shape: f32[32,64], index: 2, kind: input, shape index: {}]
  %s3 = inlined_call_operand.vmem [shape: f32[3,64], index: 3, kind: input, shape index: {}]
  %s4 = inlined_call_operand.vmem [shape: f32[64,32], index: 4, kind: output, shape index: {}]
  %s5 = sld [smem:[#allocation0]]
  $region26: #{resunet_channel_attention.1} parent=0
    _
  %s7 = ssub.s32 1, %s5
  %s8 = scalar_select 0, %s7, %s5
  // Predicated region
  $region2: #{resunet_channel_attention.1} parent=0 // pred_check
    _
  $region3: #{resunet_channel_attention.1} parent=0 // pred_check_branch
    %10 = sbr.rel (0) target = $region5
  $region4: #{resunet_channel_attention.1} parent=0 // pred_region
    _
  $region5: #{resunet_channel_attention.1} parent=0 // pred_fallthru
    _
  // Predicated region
  $region6: #{resunet_channel_attention.1} parent=0 // pred_check
    _
  $region7: #{resunet_channel_attention.1} parent=0 // pred_check_branch
    %12 = sbr.rel (0) target = $region9
  $region8: #{resunet_channel_attention.1} parent=0 // pred_region
    _
  $region9: #{resunet_channel_attention.1} parent=0 // pred_fallthru
    _
  // Predicated region
  $region10: #{resunet_channel_attention.1} parent=0 // pred_check
    _
  $region11: #{resunet_channel_attention.1} parent=0 // pred_check_branch
    %14 = sbr.rel (0) target = $region13
  $region12: #{resunet_channel_attention.1} parent=0 // pred_region
    _
  $region13: #{resunet_channel_attention.1} parent=0 // pred_fallthru
    _
  // Predicated region
  $region14: #{resunet_channel_attention.1} parent=0 // pred_check
    _
  $region15: #{resunet_channel_attention.1} parent=0 // pred_check_branch
    %16 = sbr.rel (0) target = $region17
  $region16: #{resunet_channel_attention.1} parent=0 // pred_region
    _
  $region17: #{resunet_channel_attention.1} parent=0 // pred_fallthru
    _
  %v18 = vld [vmem:[%s0] sm:$0xff]
  %v19 = vld [vmem:[%s0 + $0x8] sm:$0xff]
  %v20 = vld [vmem:[%s0 + $0x10] sm:$0xff]
  %v21 = vld [vmem:[%s0 + $0x18] sm:$0xff]
  %v22 = vld [vmem:[%s0 + $0x20] sm:$0xff]
  %v23 = vld [vmem:[%s0 + $0x28] sm:$0xff]
  %v24 = vld [vmem:[%s0 + $0x30] sm:$0xff]
  %v25 = vld [vmem:[%s0 + $0x38] sm:$0xff]
  %v26 = vpack.c.bf16 %v19, %v18
  %v27 = vpack.c.bf16 %v21, %v20
  %v28 = vpack.c.bf16 %v23, %v22
  %v29 = vpack.c.bf16 %v25, %v24
  %v30 = vld [vmem:[%s1] sm:$0xf]
  %v31 = vld [vmem:[%s1 + $0x4] sm:$0xf]
  %v32 = vld [vmem:[%s1 + $0x8] sm:$0xf]
  %v33 = vld [vmem:[%s1 + $0xc] sm:$0xf]
  %v34 = vld [vmem:[%s2] sm:$0xff]
  %v35 = vld [vmem:[%s2 + $0x8] sm:$0xff]
  %v36 = vld [vmem:[%s2 + $0x10] sm:$0xff]
  %v37 = vld [vmem:[%s2 + $0x18] sm:$0xff]
  %v38 = vld [vmem:[%s3] sm:$0x7]
  %v39 = vlaneseq
  %v40 = vshrl.u32 %v39, 7
  %v41 = vsub.s32 0, %v40
  %v42 = vrot.slane %v38, %v41
  %v47 = vunpack.c.l.b16 %v30
  %v48 = vunpack.c.l.b16 %v31
  %v49 = vunpack.c.l.b16 %v32
  %v50 = vunpack.c.l.b16 %v33
  %v51 = vpack.c.b16 %v48, %v47
  %v52 = vpack.c.b16 %v50, %v49
  %vm55 = vcmask 261120
  %v57 = vsel %vm55, %v26, 0
  %v60 = vsel %vm55, %v27, 0
  %v63 = vsel %vm55, %v28, 0
  %v66 = vsel %vm55, %v29, 0
  %68 = vmatprep.subr.bf16.mxu0 0
  %69 = vmatpush1.bf16.msra.mxu0 %v51
  %70 = vmatprep.subr.bf16.mxu0 0
  %71 = vmatpush1.bf16.msra.mxu0 %v52
  %72 = vmatprep.subr.bf16.mxu0 0
  %73 = vmatpush1.bf16.msra.mxu0 0
  %74 = vmatprep.subr.bf16.mxu0 0
  %75 = vmatpush1.bf16.msra.mxu0 0
  %76 = vmatprep.subr.bf16.mxu0 0
  %77 = vmatpush1.bf16.msra.mxu0 0
  %78 = vmatprep.subr.bf16.mxu0 0
  %79 = vmatpush1.bf16.msra.mxu0 0
  %80 = vmatprep.subr.bf16.mxu0 0
  %81 = vmatpush1.bf16.msra.mxu0 0
  %82 = vmatprep.subr.bf16.mxu0 0
  %83 = vmatpush1.bf16.msra.mxu0 0
  %84 = vmatprep.subr.bf16.mxu0 0
  %85 = vmatpush1.bf16.msra.mxu0 0
  %86 = vmatprep.subr.bf16.mxu0 0
  %87 = vmatpush1.bf16.msra.mxu0 0
  %88 = vmatprep.subr.bf16.mxu0 0
  %89 = vmatpush1.bf16.msra.mxu0 0
  %90 = vmatprep.subr.bf16.mxu0 0
  %91 = vmatpush1.bf16.msra.mxu0 0
  %92 = vmatprep.subr.bf16.mxu0 0
  %93 = vmatpush1.bf16.msra.mxu0 0
  %94 = vmatprep.subr.bf16.mxu0 0
  %95 = vmatpush1.bf16.msra.mxu0 0
  %96 = vmatprep.subr.bf16.mxu0 0
  %97 = vmatpush1.bf16.msra.mxu0 0
  %98 = vmatprep.subr.bf16.mxu0 0
  %99 = vmatpush1.bf16.msra.mxu0 0
  %100 = vmatprep.mubr.bf16.mxu0 0
  %101 = vmatmul.mubr.bf16.gmra.mrb[0].mxu0 %v57
  %v102 = vpop.f32.mrb[0].mxu0
  %v103 = vadd.f32 %v42, %v102
  %v104 = vpop.f32.mrb[0].mxu0
  %v105 = vpop.f32.mrb[0].mxu0
  %v106 = vadd.f32 %v42, %v105
  %v107 = vpop.f32.mrb[0].mxu0
  %108 = vmatprep.mubr.bf16.mxu0 0
  %109 = vmatmul.mubr.bf16.gmra.mrb[0].mxu0 %v60
  %v110 = vpop.f32.mrb[0].mxu0
  %v111 = vadd.f32 %v42, %v110
  %v112 = vpop.f32.mrb[0].mxu0
  %v113 = vpop.f32.mrb[0].mxu0
  %v114 = vadd.f32 %v42, %v113
  %v115 = vpop.f32.mrb[0].mxu0
  %116 = vmatprep.mubr.bf16.mxu0 0
  %117 = vmatmul.mubr.bf16.gmra.mrb[0].mxu0 %v63
  %v118 = vpop.f32.mrb[0].mxu0
  %v119 = vadd.f32 %v42, %v118
  %v120 = vpop.f32.mrb[0].mxu0
  %v121 = vpop.f32.mrb[0].mxu0
  %v122 = vadd.f32 %v42, %v121
  %v123 = vpop.f32.mrb[0].mxu0
  %124 = vmatprep.mubr.bf16.mxu0 0
  %125 = vmatmul.mubr.bf16.gmra.mrb[0].mxu0 %v66
  %v126 = vpop.f32.mrb[0].mxu0
  %v127 = vadd.f32 %v42, %v126
  %v128 = vpop.f32.mrb[0].mxu0
  %v129 = vpop.f32.mrb[0].mxu0
  %v130 = vadd.f32 %v42, %v129
  %v131 = vpop.f32.mrb[0].mxu0
  %132 = vdwg.mxu0
  %v133 = vpack.c.bf16 %v106, %v103
  %v134 = vpack.c.bf16 %v114, %v111
  %v135 = vpack.c.bf16 %v122, %v119
  %v136 = vpack.c.bf16 %v130, %v127
  %137 = vxpose.xlu0.c.b16.start [1/8] %v133, 128
  %138 = vxpose.xlu0.c.b16.cont [2/8] %v134, 128
  %139 = vxpose.xlu0.c.b16.cont [3/8] %v135, 128
  %140 = vxpose.xlu0.c.b16.cont [4/8] %v136, 128
  %141 = vxpose.xlu0.c.b16.cont [5/8] 0, 128
  %142 = vxpose.xlu0.c.b16.cont [6/8] 0, 128
  %143 = vxpose.xlu0.c.b16.cont [7/8] 0, 128
  %144 = vxpose.xlu0.c.b16.end [8/8] 0, 128
  %v145 = vpop.trf.xlu0
  %v146 = vpop.trf.xlu0
  %v147 = vpop.trf.xlu0
  %v148 = vpop.trf.xlu0
  %v149 = vpop.trf.xlu0
  %v150 = vpop.trf.xlu0
  %v151 = vpop.trf.xlu0
  %v152 = vpop.trf.xlu0
  %157 = vrot.lane.b32.xlu0 %v133, 96
  %v158 = vpop.permute.xlu0 %157
  %159 = vrot.lane.b32.xlu0 %v134, 96
  %v160 = vpop.permute.xlu0 %159
  %161 = vrot.lane.b32.xlu0 %v135, 96
  %v162 = vpop.permute.xlu0 %161
  %163 = vrot.lane.b32.xlu0 %v136, 96
  %v164 = vpop.permute.xlu0 %163
  %vm169 = vcmask 523264
  %v171 = vsel %vm169, %v145, 0
  %v174 = vsel %vm169, %v146, 0
  %176 = vmatprep.subr.bf16.mxu0 0
  %177 = vmatpush1.bf16.msra.mxu0 %v158
  %178 = vmatprep.subr.bf16.mxu0 0
  %179 = vmatpush1.bf16.msra.mxu0 %v160
  %180 = vmatprep.subr.bf16.mxu0 0
  %181 = vmatpush1.bf16.msra.mxu0 %v162
  %182 = vmatprep.subr.bf16.mxu0 0
  %183 = vmatpush1.bf16.msra.mxu0 %v164
  %184 = vmatprep.subr.bf16.mxu0 0
  %185 = vmatpush1.bf16.msra.mxu0 0
  %186 = vmatprep.subr.bf16.mxu0 0
  %187 = vmatpush1.bf16.msra.mxu0 0
  %188 = vmatprep.subr.bf16.mxu0 0
  %189 = vmatpush1.bf16.msra.mxu0 0
  %190 = vmatprep.subr.bf16.mxu0 0
  %191 = vmatpush1.bf16.msra.mxu0 0
  %192 = vmatprep.subr.bf16.mxu0 0
  %193 = vmatpush1.bf16.msra.mxu0 0
  %194 = vmatprep.subr.bf16.mxu0 0
  %195 = vmatpush1.bf16.msra.mxu0 0
  %196 = vmatprep.subr.bf16.mxu0 0
  %197 = vmatpush1.bf16.msra.mxu0 0
  %198 = vmatprep.subr.bf16.mxu0 0
  %199 = vmatpush1.bf16.msra.mxu0 0
  %200 = vmatprep.subr.bf16.mxu0 0
  %201 = vmatpush1.bf16.msra.mxu0 0
  %202 = vmatprep.subr.bf16.mxu0 0
  %203 = vmatpush1.bf16.msra.mxu0 0
  %204 = vmatprep.subr.bf16.mxu0 0
  %205 = vmatpush1.bf16.msra.mxu0 0
  %206 = vmatprep.subr.bf16.mxu0 0
  %207 = vmatpush1.bf16.msra.mxu0 0
  %208 = vmatprep.mubr.bf16.mxu0 0
  %209 = vmatmul.mubr.bf16.gmra.mrb[0].mxu0 %v171
  %v210 = vpop.f32.mrb[0].mxu0
  %v211 = vadd.f32 0.0, %v210
  %v212 = vpop.f32.mrb[0].mxu0
  %v213 = vpop.f32.mrb[0].mxu0
  %v214 = vadd.f32 0.0, %v213
  %v215 = vpop.f32.mrb[0].mxu0
  %216 = vmatprep.mubr.bf16.mxu0 0
  %217 = vmatmul.mubr.bf16.gmra.mrb[0].mxu0 %v174
  %v218 = vpop.f32.mrb[0].mxu0
  %v219 = vadd.f32 0.0, %v218
  %v220 = vpop.f32.mrb[0].mxu0
  %v221 = vpop.f32.mrb[0].mxu0
  %v222 = vadd.f32 0.0, %v221
  %v223 = vpop.f32.mrb[0].mxu0
  %224 = vdwg.mxu0
  %v225 = vsel %vm55, %v211, -inf
  %226 = vmax.xlane.f32.xlu0 %v225
  %v227 = vpop.xlane.xlu0 %226
  %v228 = vsel %vm55, %v214, -inf
  %229 = vmax.xlane.f32.xlu0 %v228
  %v230 = vpop.xlane.xlu0 %229
  %v231 = vsel %vm55, %v219, -inf
  %232 = vmax.xlane.f32.xlu0 %v231
  %v233 = vpop.xlane.xlu0 %232
  %v234 = vsel %vm55, %v222, -inf
  %235 = vmax.xlane.f32.xlu0 %v234
  %v236 = vpop.xlane.xlu0 %235
  %v237 = vsub.f32 %v211, %v227
  %v238 = vsub.f32 %v214, %v230
  %v239 = vsub.f32 %v219, %v233
  %v240 = vsub.f32 %v222, %v236
  %v241 = vmul.f32 %v237, 1.442695
  %v242 = vpow.pop %v241
  %v243 = vmul.f32 %v238, 1.442695
  %v244 = vpow.pop %v243
  %v245 = vmul.f32 %v239, 1.442695
  %v246 = vpow.pop %v245
  %v247 = vmul.f32 %v240, 1.442695
  %v248 = vpow.pop %v247
  %v249 = vsel %vm55, %v242, 0.0
  %250 = vadd.xlane.f32.xlu0 %v249
  %v251 = vpop.xlane.xlu0 %250
  %v252 = vsel %vm55, %v244, 0.0
  %253 = vadd.xlane.f32.xlu0 %v252
  %v254 = vpop.xlane.xlu0 %253
  %v255 = vsel %vm55, %v246, 0.0
  %256 = vadd.xlane.f32.xlu0 %v255
  %v257 = vpop.xlane.xlu0 %256
  %v258 = vsel %vm55, %v248, 0.0
  %259 = vadd.xlane.f32.xlu0 %v258
  %v260 = vpop.xlane.xlu0 %259
  %v261 = vrcp.pop %v251
  %v262 = vrcp.pop %v254
  %v263 = vrcp.pop %v257
  %v264 = vrcp.pop %v260
  %v265 = vmul.f32 %v251, %v261
  %v266 = vmul.f32 %v254, %v262
  %v267 = vmul.f32 %v257, %v263
  %v268 = vmul.f32 %v260, %v264
  %v269 = vsub.f32 2.0, %v265
  %v270 = vsub.f32 2.0, %v266
  %v271 = vsub.f32 2.0, %v267
  %v272 = vsub.f32 2.0, %v268
  %v273 = vmul.f32 %v261, %v269
  %v274 = vmul.f32 %v262, %v270
  %v275 = vmul.f32 %v263, %v271
  %v276 = vmul.f32 %v264, %v272
  %v277 = vmul.f32 %v242, %v273
  %v278 = vmul.f32 %v244, %v274
  %v279 = vmul.f32 %v246, %v275
  %v280 = vmul.f32 %v248, %v276
  %v281 = vlaneseq
  %v282 = vshrl.u32 %v281, 7
  %v283 = vadd.s32 %v282, 8
  %v284 = vadd.s32 %v282, 16
  %v285 = vadd.s32 %v282, 24
  %v286 = vlaneseq
  %v287 = vand.u32 %v286, 127
  %vm288 = vcmp.eq.s32.totalorder %v282, %v287
  %vm289 = vcmp.eq.s32.totalorder %v283, %v287
  %vm290 = vcmp.eq.s32.totalorder %v284, %v287
  %vm291 = vcmp.eq.s32.totalorder %v285, %v287
  %v292 = vsel %vm288, 1, 0
  %v293 = vsel %vm289, 1, 0
  %v294 = vsel %vm290, 1, 0
  %v295 = vsel %vm291, 1, 0
  %v296 = vcvt.s32.f32 %v292
  %v297 = vcvt.s32.f32 %v293
  %v298 = vcvt.s32.f32 %v294
  %v299 = vcvt.s32.f32 %v295
  %v300 = vsub.f32 %v277, %v296
  %v301 = vsub.f32 %v278, %v297
  %v302 = vsub.f32 %v279, %v298
  %v303 = vsub.f32 %v280, %v299
  %308 = vrot.lane.b32.xlu0 %v34, 96
  %v309 = vpop.permute.xlu0 %308
  %310 = vrot.lane.b32.xlu0 %v35, 96
  %v311 = vpop.permute.xlu0 %310
  %312 = vrot.lane.b32.xlu0 %v36, 96
  %v313 = vpop.permute.xlu0 %312
  %314 = vrot.lane.b32.xlu0 %v37, 96
  %v315 = vpop.permute.xlu0 %314
  %v321 = vsel %vm55, %v300, 0
  %v324 = vsel %vm55, %v301, 0
  %v327 = vsel %vm55, %v302, 0
  %v330 = vsel %vm55, %v303, 0
  %332 = vmatprep.subr.mxu0 0.0
  %333 = vmatpush1.msra.mxu0 %v309
  %334 = vmatprep.subr.mxu0 0.0
  %335 = vmatpush1.msra.mxu0 %v311
  %336 = vmatprep.subr.mxu0 0.0
  %337 = vmatpush1.msra.mxu0 %v313
  %338 = vmatprep.subr.mxu0 0.0
  %339 = vmatpush1.msra.mxu0 %v315
  %340 = vmatprep.subr.mxu0 0.0
  %341 = vmatpush1.msra.mxu0 0.0
  %342 = vmatprep.subr.mxu0 0.0
  %343 = vmatpush1.msra.mxu0 0.0
  %344 = vmatprep.subr.mxu0 0.0
  %345 = vmatpush1.msra.mxu0 0.0
  %346 = vmatprep.subr.mxu0 0.0
  %347 = vmatpush1.msra.mxu0 0.0
  %348 = vmatprep.subr.mxu0 0.0
  %349 = vmatpush1.msra.mxu0 0.0
  %350 = vmatprep.subr.mxu0 0.0
  %351 = vmatpush1.msra.mxu0 0.0
  %352 = vmatprep.subr.mxu0 0.0
  %353 = vmatpush1.msra.mxu0 0.0
  %354 = vmatprep.subr.mxu0 0.0
  %355 = vmatpush1.msra.mxu0 0.0
  %356 = vmatprep.subr.mxu0 0.0
  %357 = vmatpush1.msra.mxu0 0.0
  %358 = vmatprep.subr.mxu0 0.0
  %359 = vmatpush1.msra.mxu0 0.0
  %360 = vmatprep.subr.mxu0 0.0
  %361 = vmatpush1.msra.mxu0 0.0
  %362 = vmatprep.subr.mxu0 0.0
  %363 = vmatpush1.msra.mxu0 0.0
  %364 = vmatprep.subr.mxu0 0.0
  %365 = vmatpush1.msra.mxu0 0.0
  %366 = vmatprep.subr.mxu0 0.0
  %367 = vmatpush1.msra.mxu0 0.0
  %368 = vmatprep.subr.mxu0 0.0
  %369 = vmatpush1.msra.mxu0 0.0
  %370 = vmatprep.subr.mxu0 0.0
  %371 = vmatpush1.msra.mxu0 0.0
  %372 = vmatprep.subr.mxu0 0.0
  %373 = vmatpush1.msra.mxu0 0.0
  %374 = vmatprep.subr.mxu0 0.0
  %375 = vmatpush1.msra.mxu0 0.0
  %376 = vmatprep.subr.mxu0 0.0
  %377 = vmatpush1.msra.mxu0 0.0
  %378 = vmatprep.subr.mxu0 0.0
  %379 = vmatpush1.msra.mxu0 0.0
  %380 = vmatprep.subr.mxu0 0.0
  %381 = vmatpush1.msra.mxu0 0.0
  %382 = vmatprep.subr.mxu0 0.0
  %383 = vmatpush1.msra.mxu0 0.0
  %384 = vmatprep.subr.mxu0 0.0
  %385 = vmatpush1.msra.mxu0 0.0
  %386 = vmatprep.subr.mxu0 0.0
  %387 = vmatpush1.msra.mxu0 0.0
  %388 = vmatprep.subr.mxu0 0.0
  %389 = vmatpush1.msra.mxu0 0.0
  %390 = vmatprep.subr.mxu0 0.0
  %391 = vmatpush1.msra.mxu0 0.0
  %392 = vmatprep.subr.mxu0 0.0
  %393 = vmatpush1.msra.mxu0 0.0
  %394 = vmatprep.subr.mxu0 0.0
  %395 = vmatpush1.msra.mxu0 0.0
  %396 = vmatprep.mubr.f32.mxu0 0.0
  %397 = vmatmul.mubr.f32.gmra.mrb[0].mxu0 %v321
  %v398 = vpop.f32.mrb[0].mxu0
  %v399 = vadd.f32 0.0, %v398
  %v400 = vpop.f32.mrb[0].mxu0
  %401 = vmatprep.mubr.f32.mxu0 0.0
  %402 = vmatmul.mubr.f32.gmra.mrb[0].mxu0 %v324
  %v403 = vpop.f32.mrb[0].mxu0
  %v404 = vadd.f32 0.0, %v403
  %v405 = vpop.f32.mrb[0].mxu0
  %406 = vmatprep.mubr.f32.mxu0 0.0
  %407 = vmatmul.mubr.f32.gmra.mrb[0].mxu0 %v327
  %v408 = vpop.f32.mrb[0].mxu0
  %v409 = vadd.f32 0.0, %v408
  %v410 = vpop.f32.mrb[0].mxu0
  %411 = vmatprep.mubr.f32.mxu0 0.0
  %412 = vmatmul.mubr.f32.gmra.mrb[0].mxu0 %v330
  %v413 = vpop.f32.mrb[0].mxu0
  %v414 = vadd.f32 0.0, %v413
  %v415 = vpop.f32.mrb[0].mxu0
  %416 = vdwg.mxu0
  %v417 = vsel %vm55, %v34, 0
  %v419 = vsel %vm55, %v35, 0
  %v421 = vsel %vm55, %v36, 0
  %v423 = vsel %vm55, %v37, 0
  %425 = vmatprep.subr.mxu0 0.0
  %426 = vmatpush1.msra.mxu0 %v399
  %427 = vmatprep.subr.mxu0 0.0
  %428 = vmatpush1.msra.mxu0 %v404
  %429 = vmatprep.subr.mxu0 0.0
  %430 = vmatpush1.msra.mxu0 %v409
  %431 = vmatprep.subr.mxu0 0.0
  %432 = vmatpush1.msra.mxu0 %v414
  %433 = vmatprep.subr.mxu0 0.0
  %434 = vmatpush1.msra.mxu0 0.0
  %435 = vmatprep.subr.mxu0 0.0
  %436 = vmatpush1.msra.mxu0 0.0
  %437 = vmatprep.subr.mxu0 0.0
  %438 = vmatpush1.msra.mxu0 0.0
  %439 = vmatprep.subr.mxu0 0.0
  %440 = vmatpush1.msra.mxu0 0.0
  %441 = vmatprep.subr.mxu0 0.0
  %442 = vmatpush1.msra.mxu0 0.0
  %443 = vmatprep.subr.mxu0 0.0
  %444 = vmatpush1.msra.mxu0 0.0
  %445 = vmatprep.subr.mxu0 0.0
  %446 = vmatpush1.msra.mxu0 0.0
  %447 = vmatprep.subr.mxu0 0.0
  %448 = vmatpush1.msra.mxu0 0.0
  %449 = vmatprep.subr.mxu0 0.0
  %450 = vmatpush1.msra.mxu0 0.0
  %451 = vmatprep.subr.mxu0 0.0
  %452 = vmatpush1.msra.mxu0 0.0
  %453 = vmatprep.subr.mxu0 0.0
  %454 = vmatpush1.msra.mxu0 0.0
  %455 = vmatprep.subr.mxu0 0.0
  %456 = vmatpush1.msra.mxu0 0.0
  %457 = vmatprep.subr.mxu0 0.0
  %458 = vmatpush1.msra.mxu0 0.0
  %459 = vmatprep.subr.mxu0 0.0
  %460 = vmatpush1.msra.mxu0 0.0
  %461 = vmatprep.subr.mxu0 0.0
  %462 = vmatpush1.msra.mxu0 0.0
  %463 = vmatprep.subr.mxu0 0.0
  %464 = vmatpush1.msra.mxu0 0.0
  %465 = vmatprep.subr.mxu0 0.0
  %466 = vmatpush1.msra.mxu0 0.0
  %467 = vmatprep.subr.mxu0 0.0
  %468 = vmatpush1.msra.mxu0 0.0
  %469 = vmatprep.subr.mxu0 0.0
  %470 = vmatpush1.msra.mxu0 0.0
  %471 = vmatprep.subr.mxu0 0.0
  %472 = vmatpush1.msra.mxu0 0.0
  %473 = vmatprep.subr.mxu0 0.0
  %474 = vmatpush1.msra.mxu0 0.0
  %475 = vmatprep.subr.mxu0 0.0
  %476 = vmatpush1.msra.mxu0 0.0
  %477 = vmatprep.subr.mxu0 0.0
  %478 = vmatpush1.msra.mxu0 0.0
  %479 = vmatprep.subr.mxu0 0.0
  %480 = vmatpush1.msra.mxu0 0.0
  %481 = vmatprep.subr.mxu0 0.0
  %482 = vmatpush1.msra.mxu0 0.0
  %483 = vmatprep.subr.mxu0 0.0
  %484 = vmatpush1.msra.mxu0 0.0
  %485 = vmatprep.subr.mxu0 0.0
  %486 = vmatpush1.msra.mxu0 0.0
  %487 = vmatprep.subr.mxu0 0.0
  %488 = vmatpush1.msra.mxu0 0.0
  %489 = vmatprep.mubr.f32.mxu0 0.0
  %490 = vmatmul.mubr.f32.gmra.mrb[0].mxu0 %v417
  %v491 = vpop.f32.mrb[0].mxu0
  %v492 = vadd.f32 0.0, %v491
  %v493 = vpop.f32.mrb[0].mxu0
  %494 = vmatprep.mubr.f32.mxu0 0.0
  %495 = vmatmul.mubr.f32.gmra.mrb[0].mxu0 %v419
  %v496 = vpop.f32.mrb[0].mxu0
  %v497 = vadd.f32 0.0, %v496
  %v498 = vpop.f32.mrb[0].mxu0
  %499 = vmatprep.mubr.f32.mxu0 0.0
  %500 = vmatmul.mubr.f32.gmra.mrb[0].mxu0 %v421
  %v501 = vpop.f32.mrb[0].mxu0
  %v502 = vadd.f32 0.0, %v501
  %v503 = vpop.f32.mrb[0].mxu0
  %504 = vmatprep.mubr.f32.mxu0 0.0
  %505 = vmatmul.mubr.f32.gmra.mrb[0].mxu0 %v423
  %v506 = vpop.f32.mrb[0].mxu0
  %v507 = vadd.f32 0.0, %v506
  %v508 = vpop.f32.mrb[0].mxu0
  %509 = vdwg.mxu0
  %v511 = vrot.slane %v38, 1
  %512 = vrot.lane.b32.xlu0 %v511, 96
  %v513 = vpop.permute.xlu0 %512
  %v515 = vsel %vm55, %v511, 0
  %517 = vmatprep.subr.mxu0 0.0
  %518 = vmatpush1.msra.mxu0 %v399
  %519 = vmatprep.subr.mxu0 0.0
  %520 = vmatpush1.msra.mxu0 %v404
  %521 = vmatprep.subr.mxu0 0.0
  %522 = vmatpush1.msra.mxu0 %v409
  %523 = vmatprep.subr.mxu0 0.0
  %524 = vmatpush1.msra.mxu0 %v414
  %525 = vmatprep.subr.mxu0 0.0
  %526 = vmatpush1.msra.mxu0 0.0
  %527 = vmatprep.subr.mxu0 0.0
  %528 = vmatpush1.msra.mxu0 0.0
  %529 = vmatprep.subr.mxu0 0.0
  %530 = vmatpush1.msra.mxu0 0.0
  %531 = vmatprep.subr.mxu0 0.0
  %532 = vmatpush1.msra.mxu0 0.0
  %533 = vmatprep.subr.mxu0 0.0
  %534 = vmatpush1.msra.mxu0 0.0
  %535 = vmatprep.subr.mxu0 0.0
  %536 = vmatpush1.msra.mxu0 0.0
  %537 = vmatprep.subr.mxu0 0.0
  %538 = vmatpush1.msra.mxu0 0.0
  %539 = vmatprep.subr.mxu0 0.0
  %540 = vmatpush1.msra.mxu0 0.0
  %541 = vmatprep.subr.mxu0 0.0
  %542 = vmatpush1.msra.mxu0 0.0
  %543 = vmatprep.subr.mxu0 0.0
  %544 = vmatpush1.msra.mxu0 0.0
  %545 = vmatprep.subr.mxu0 0.0
  %546 = vmatpush1.msra.mxu0 0.0
  %547 = vmatprep.subr.mxu0 0.0
  %548 = vmatpush1.msra.mxu0 0.0
  %549 = vmatprep.subr.mxu0 0.0
  %550 = vmatpush1.msra.mxu0 0.0
  %551 = vmatprep.subr.mxu0 0.0
  %552 = vmatpush1.msra.mxu0 0.0
  %553 = vmatprep.subr.mxu0 0.0
  %554 = vmatpush1.msra.mxu0 0.0
  %555 = vmatprep.subr.mxu0 0.0
  %556 = vmatpush1.msra.mxu0 0.0
  %557 = vmatprep.subr.mxu0 0.0
  %558 = vmatpush1.msra.mxu0 0.0
  %559 = vmatprep.subr.mxu0 0.0
  %560 = vmatpush1.msra.mxu0 0.0
  %561 = vmatprep.subr.mxu0 0.0
  %562 = vmatpush1.msra.mxu0 0.0
  %563 = vmatprep.subr.mxu0 0.0
  %564 = vmatpush1.msra.mxu0 0.0
  %565 = vmatprep.subr.mxu0 0.0
  %566 = vmatpush1.msra.mxu0 0.0
  %567 = vmatprep.subr.mxu0 0.0
  %568 = vmatpush1.msra.mxu0 0.0
  %569 = vmatprep.subr.mxu0 0.0
  %570 = vmatpush1.msra.mxu0 0.0
  %571 = vmatprep.subr.mxu0 0.0
  %572 = vmatpush1.msra.mxu0 0.0
  %573 = vmatprep.subr.mxu0 0.0
  %574 = vmatpush1.msra.mxu0 0.0
  %575 = vmatprep.subr.mxu0 0.0
  %576 = vmatpush1.msra.mxu0 0.0
  %577 = vmatprep.subr.mxu0 0.0
  %578 = vmatpush1.msra.mxu0 0.0
  %579 = vmatprep.subr.mxu0 0.0
  %580 = vmatpush1.msra.mxu0 0.0
  %581 = vmatprep.mubr.f32.mxu0 0.0
  %582 = vmatmul.mubr.f32.gmra.mrb[0].mxu0 %v515
  %v583 = vpop.f32.mrb[0].mxu0
  %v584 = vadd.f32 %v513, %v583
  %v585 = vpop.f32.mrb[0].mxu0
  %586 = vdwg.mxu0
  %v587 = vpack.c.bf16 %v497, %v492
  %v588 = vpack.c.bf16 %v507, %v502
  %v589 = vlaneseq
  %v590 = vshrl.u32 %v589, 7
  %v591 = vsub.s32 0, %v590
  %v592 = vrot.slane %v584, %v591
  %593 = vmatprep.subr.bf16.mxu0 0
  %594 = vmatpush1.bf16.msra.mxu0 %v587
  %595 = vmatprep.subr.bf16.mxu0 0
  %596 = vmatpush1.bf16.msra.mxu0 %v588
  %597 = vmatprep.subr.bf16.mxu0 0
  %598 = vmatpush1.bf16.msra.mxu0 0
  %599 = vmatprep.subr.bf16.mxu0 0
  %600 = vmatpush1.bf16.msra.mxu0 0
  %601 = vmatprep.subr.bf16.mxu0 0
  %602 = vmatpush1.bf16.msra.mxu0 0
  %603 = vmatprep.subr.bf16.mxu0 0
  %604 = vmatpush1.bf16.msra.mxu0 0
  %605 = vmatprep.subr.bf16.mxu0 0
  %606 = vmatpush1.bf16.msra.mxu0 0
  %607 = vmatprep.subr.bf16.mxu0 0
  %608 = vmatpush1.bf16.msra.mxu0 0
  %609 = vmatprep.subr.bf16.mxu0 0
  %610 = vmatpush1.bf16.msra.mxu0 0
  %611 = vmatprep.subr.bf16.mxu0 0
  %612 = vmatpush1.bf16.msra.mxu0 0
  %613 = vmatprep.subr.bf16.mxu0 0
  %614 = vmatpush1.bf16.msra.mxu0 0
  %615 = vmatprep.subr.bf16.mxu0 0
  %616 = vmatpush1.bf16.msra.mxu0 0
  %617 = vmatprep.subr.bf16.mxu0 0
  %618 = vmatpush1.bf16.msra.mxu0 0
  %619 = vmatprep.subr.bf16.mxu0 0
  %620 = vmatpush1.bf16.msra.mxu0 0
  %621 = vmatprep.subr.bf16.mxu0 0
  %622 = vmatpush1.bf16.msra.mxu0 0
  %623 = vmatprep.subr.bf16.mxu0 0
  %624 = vmatpush1.bf16.msra.mxu0 0
  %625 = vmatprep.mubr.bf16.mxu0 0
  %626 = vmatmul.mubr.bf16.gmra.mrb[0].mxu0 %v57
  %v627 = vpop.f32.mrb[0].mxu0
  %v628 = vadd.f32 %v592, %v627
  %v629 = vpop.f32.mrb[0].mxu0
  %v630 = vpop.f32.mrb[0].mxu0
  %v631 = vadd.f32 %v592, %v630
  %v632 = vpop.f32.mrb[0].mxu0
  %633 = vmatprep.mubr.bf16.mxu0 0
  %634 = vmatmul.mubr.bf16.gmra.mrb[0].mxu0 %v60
  %v635 = vpop.f32.mrb[0].mxu0
  %v636 = vadd.f32 %v592, %v635
  %v637 = vpop.f32.mrb[0].mxu0
  %v638 = vpop.f32.mrb[0].mxu0
  %v639 = vadd.f32 %v592, %v638
  %v640 = vpop.f32.mrb[0].mxu0
  %641 = vmatprep.mubr.bf16.mxu0 0
  %642 = vmatmul.mubr.bf16.gmra.mrb[0].mxu0 %v63
  %v643 = vpop.f32.mrb[0].mxu0
  %v644 = vadd.f32 %v592, %v643
  %v645 = vpop.f32.mrb[0].mxu0
  %v646 = vpop.f32.mrb[0].mxu0
  %v647 = vadd.f32 %v592, %v646
  %v648 = vpop.f32.mrb[0].mxu0
  %649 = vmatprep.mubr.bf16.mxu0 0
  %650 = vmatmul.mubr.bf16.gmra.mrb[0].mxu0 %v66
  %v651 = vpop.f32.mrb[0].mxu0
  %v652 = vadd.f32 %v592, %v651
  %v653 = vpop.f32.mrb[0].mxu0
  %v654 = vpop.f32.mrb[0].mxu0
  %v655 = vadd.f32 %v592, %v654
  %v656 = vpop.f32.mrb[0].mxu0
  %657 = vdwg.mxu0
  %v658 = vsel %vm55, %v628, 0.0
  %v659 = vsel %vm55, %v631, 0.0
  %v660 = vadd.f32 %v658, %v659
  %v661 = vsel %vm55, %v636, 0.0
  %v662 = vadd.f32 %v660, %v661
  %v663 = vsel %vm55, %v639, 0.0
  %v664 = vadd.f32 %v662, %v663
  %v665 = vsel %vm55, %v644, 0.0
  %v666 = vadd.f32 %v664, %v665
  %v667 = vsel %vm55, %v647, 0.0
  %v668 = vadd.f32 %v666, %v667
  %v669 = vsel %vm55, %v652, 0.0
  %v670 = vadd.f32 %v668, %v669
  %v671 = vsel %vm55, %v655, 0.0
  %v672 = vadd.f32 %v670, %v671
  %v673 = vrot.slane %v672, 4
  %v674 = vadd.f32 %v672, %v673
  %v675 = vrot.slane %v674, 2
  %v676 = vadd.f32 %v674, %v675
  %v677 = vrot.slane %v676, 1
  %v678 = vadd.f32 %v676, %v677
  %v679 = vmul.f32 %v678, 0.015625
  %v680 = vmul.f32 %v628, %v628
  %v681 = vmul.f32 %v631, %v631
  %v682 = vmul.f32 %v636, %v636
  %v683 = vmul.f32 %v639, %v639
  %v684 = vmul.f32 %v644, %v644
  %v685 = vmul.f32 %v647, %v647
  %v686 = vmul.f32 %v652, %v652
  %v687 = vmul.f32 %v655, %v655
  %v688 = vsel %vm55, %v680, 0.0
  %v689 = vsel %vm55, %v681, 0.0
  %v690 = vadd.f32 %v688, %v689
  %v691 = vsel %vm55, %v682, 0.0
  %v692 = vadd.f32 %v690, %v691
  %v693 = vsel %vm55, %v683, 0.0
  %v694 = vadd.f32 %v692, %v693
  %v695 = vsel %vm55, %v684, 0.0
  %v696 = vadd.f32 %v694, %v695
  %v697 = vsel %vm55, %v685, 0.0
  %v698 = vadd.f32 %v696, %v697
  %v699 = vsel %vm55, %v686, 0.0
  %v700 = vadd.f32 %v698, %v699
  %v701 = vsel %vm55, %v687, 0.0
  %v702 = vadd.f32 %v700, %v701
  %v703 = vrot.slane %v702, 4
  %v704 = vadd.f32 %v702, %v703
  %v705 = vrot.slane %v704, 2
  %v706 = vadd.f32 %v704, %v705
  %v707 = vrot.slane %v706, 1
  %v708 = vadd.f32 %v706, %v707
  %v709 = vmul.f32 %v708, 0.015625
  %v710 = vmul.f32 %v679, %v679
  %v711 = vsub.f32 %v709, %v710
  %v712 = vmax.f32 %v711, 0.0
  %v713 = vsub.f32 %v628, %v679
  %v714 = vsub.f32 %v631, %v679
  %v715 = vsub.f32 %v636, %v679
  %v716 = vsub.f32 %v639, %v679
  %v717 = vsub.f32 %v644, %v679
  %v718 = vsub.f32 %v647, %v679
  %v719 = vsub.f32 %v652, %v679
  %v720 = vsub.f32 %v655, %v679
  %v721 = vadd.f32 %v712, 1e-05
  %v722 = vrsqrt.pop %v721
  %v723 = vmul.f32 %v713, %v722
  %v724 = vmul.f32 %v714, %v722
  %v725 = vmul.f32 %v715, %v722
  %v726 = vmul.f32 %v716, %v722
  %v727 = vmul.f32 %v717, %v722
  %v728 = vmul.f32 %v718, %v722
  %v729 = vmul.f32 %v719, %v722
  %v730 = vmul.f32 %v720, %v722
  %v731 = vlaneseq
  %v732 = vshrl.u32 %v731, 7
  %v733 = vsub.s32 2, %v732
  %v734 = vrot.slane %v38, %v733
  %v735 = vmul.f32 %v723, %v734
  %v736 = vmul.f32 %v724, %v734
  %v737 = vmul.f32 %v725, %v734
  %v738 = vmul.f32 %v726, %v734
  %v739 = vmul.f32 %v727, %v734
  %v740 = vmul.f32 %v728, %v734
  %v741 = vmul.f32 %v729, %v734
  %v742 = vmul.f32 %v730, %v734
  %744 = vrot.lane.b32.xlu0 %v734, 96
  %v745 = vpop.permute.xlu0 %744
  %v747 = vadd.f32 %v735, %v745
  %v748 = vadd.f32 %v736, %v745
  %v749 = vadd.f32 %v737, %v745
  %v750 = vadd.f32 %v738, %v745
  %v751 = vadd.f32 %v739, %v745
  %v752 = vadd.f32 %v740, %v745
  %v753 = vadd.f32 %v741, %v745
  %v754 = vadd.f32 %v742, %v745
  %v755 = vmax.f32 %v747, 0.0
  %v756 = vmax.f32 %v748, 0.0
  %v757 = vmax.f32 %v749, 0.0
  %v758 = vmax.f32 %v750, 0.0
  %v759 = vmax.f32 %v751, 0.0
  %v760 = vmax.f32 %v752, 0.0
  %v761 = vmax.f32 %v753, 0.0
  %v762 = vmax.f32 %v754, 0.0
  %v763 = vadd.f32 %v755, %v18
  %v764 = vadd.f32 %v756, %v19
  %v765 = vadd.f32 %v757, %v20
  %v766 = vadd.f32 %v758, %v21
  %v767 = vadd.f32 %v759, %v22
  %v768 = vadd.f32 %v760, %v23
  %v769 = vadd.f32 %v761, %v24
  %v770 = vadd.f32 %v762, %v25
  %771 = vst.msk [vmem:[%s4] sm:$0xff] %vm55, %v763
  %772 = vst.msk [vmem:[%s4 + $0x8] sm:$0xff] %vm55, %v764
  %773 = vst.msk [vmem:[%s4 + $0x10] sm:$0xff] %vm55, %v765
  %774 = vst.msk [vmem:[%s4 + $0x18] sm:$0xff] %vm55, %v766
  %775 = vst.msk [vmem:[%s4 + $0x20] sm:$0xff] %vm55, %v767
  %776 = vst.msk [vmem:[%s4 + $0x28] sm:$0xff] %vm55, %v768
  %777 = vst.msk [vmem:[%s4 + $0x30] sm:$0xff] %vm55, %v769
  %778 = vst.msk [vmem:[%s4 + $0x38] sm:$0xff] %vm55, %v770
  // Predicated region
  $region18: #{resunet_channel_attention.1} parent=0 // pred_check
    _
  $region19: #{resunet_channel_attention.1} parent=0 // pred_check_branch
    %780 = sbr.rel (0) target = $region21
  $region20: #{resunet_channel_attention.1} parent=0 // pred_region
    _
  $region21: #{resunet_channel_attention.1} parent=0 // pred_fallthru
    _
  // Predicated region
  $region22: #{resunet_channel_attention.1} parent=0 // pred_check
    _
  $region23: #{resunet_channel_attention.1} parent=0 // pred_check_branch
    %782 = sbr.rel (0) target = $region25
  $region24: #{resunet_channel_attention.1} parent=0 // pred_region
    _
  $region25: #{resunet_channel_attention.1} parent=0 // pred_fallthru
    _

</llo_original>
